<compile_context>
chip_gen: v5e
topology: v5e:2x2
jax: 0.10.0
libtpu: 0.0.40
codegen_flags: <defaults>
</compile_context>

<pallas_src>
import functools

import jax
import jax.numpy as jnp
from jax.experimental import pallas as pl
from jax.experimental.pallas import tpu as pltpu

IN_FEATURES = 4
HIDDEN1 = 30
HIDDEN2 = 20
OUT_FEATURES = 2

_FLOPS_PER_ROW = 2 * (IN_FEATURES * HIDDEN1 + HIDDEN1 * HIDDEN2 + HIDDEN2 * OUT_FEATURES)


def _round_up(n, m):
    return ((n + m - 1) // m) * m


def _cdiv(a, b):
    return -(-a // b)


def _choose_tiling(B, target_tb):
    """Pick (num_tiles, tile_lanes, padded_batch) with <128 rows of padding per tile."""
    target_tb = max(128, _round_up(int(target_tb), 128))
    nt = _cdiv(B, target_tb)
    # Prefer >= 2 grid steps once the batch is big enough that the second tile is
    # not mostly padding: keeps both v7x TensorCores + double buffering engaged.
    if nt == 1 and B >= 4096:
        nt = 2
    tb = _round_up(_cdiv(B, nt), 128)
    return nt, tb, nt * tb


def _critic_mlp_kernel(x_ref, w1_ref, b1_ref, w2_ref, b2_ref, w3_ref, b3_ref, o_ref,
                       *, compute_dtype):
    """Fused 3-layer MLP on one batch tile (transposed, lane-dense layout).

    x_ref : (IN, TB)    batch on lanes
    wN    : (out, in)   PyTorch layout, used directly as W @ x (bf16 or f32)
    bN    : (out, 1)    f32, broadcast implicitly across lanes in the add
    o_ref : (OUT, TB)   f32
    """
    xt = x_ref[...].astype(compute_dtype)
    h1 = jnp.dot(w1_ref[...], xt, preferred_element_type=jnp.float32) + b1_ref[...]
    h1 = jnp.maximum(h1, 0.0).astype(compute_dtype)
    h2 = jnp.dot(w2_ref[...], h1, preferred_element_type=jnp.float32) + b2_ref[...]
    h2 = jnp.maximum(h2, 0.0).astype(compute_dtype)
    o_ref[...] = (jnp.dot(w3_ref[...], h2, preferred_element_type=jnp.float32)
                  + b3_ref[...]).astype(o_ref.dtype)


def cartpole_critic_forward_t(xT, params, *, target_tb=32768, use_bf16=True):
    """Feature-major entry: xT is (IN_FEATURES, B) f32 -> (OUT_FEATURES, B) f32.

    No wrapper-side transpose HBM pass; preferred for rollout buffers stored
    feature-major.
    """
    w1, b1, w2, b2, w3, b3 = params
    B = xT.shape[1]
    nt, TB, Bp = _choose_tiling(B, target_tb)
    if Bp != B:
        # Explicit zero-pad keeps the last tile's DMA in-bounds; padded columns are
        # sliced off below.
        xT = jnp.pad(xT, ((0, 0), (0, Bp - B)))

    compute_dtype = jnp.bfloat16 if use_bf16 else jnp.float32
    if use_bf16:
        w1, w2, w3 = (w.astype(jnp.bfloat16) for w in (w1, w2, w3))

    # Per-step VMEM estimate: x f32 dbl-buf (32 B/lane) + out f32 dbl-buf (16) +
    # h1/h2 f32 (200) + bf16 temps (~110) + weight buffers/headroom.
    est_vmem = TB * 384 + (2 << 20)
    vmem_limit = int(min(48 << 20, max(32 << 20, 2 * est_vmem)))

    full = lambda a: pl.BlockSpec(a.shape, lambda i: (0,) * a.ndim)
    kernel = functools.partial(_critic_mlp_kernel, compute_dtype=compute_dtype)

    outT = pl.pallas_call(
        kernel,
        out_shape=jax.ShapeDtypeStruct((OUT_FEATURES, Bp), jnp.float32),
        grid=(nt,),
        in_specs=[
            pl.BlockSpec((IN_FEATURES, TB), lambda i: (0, i)),   # x tile, pipelined
            full(w1), full(b1), full(w2), full(b2), full(w3), full(b3),
        ],
        out_specs=pl.BlockSpec((OUT_FEATURES, TB), lambda i: (0, i)),
        compiler_params=pltpu.CompilerParams(
            dimension_semantics=("parallel",),   # megacore sharding on v7x
            vmem_limit_bytes=vmem_limit,
        ),
        cost_estimate=pl.CostEstimate(
            flops=_FLOPS_PER_ROW * Bp,
            transcendentals=0,
            bytes_accessed=Bp * (IN_FEATURES + OUT_FEATURES) * 4,
        ),
    )(xT, w1, b1, w2, b2, w3, b3)

    return outT[:, :B]


def cartpole_critic_forward(x, params, *, target_tb=32768, use_bf16=True,
                            min_pallas_batch=1024):
    """Batch-major convenience entry: x (B, IN_FEATURES) f32 -> (B, OUT_FEATURES) f32."""
    B = x.shape[0]
    if B < min_pallas_batch:
        # Below ~1K rows the pallas_call launch + pipeline prologue exceeds the
        # useful work; plain XLA is faster.
        return reference_forward(x, params)
    # TODO(synk): callers holding feature-major rollout buffers should call
    # cartpole_critic_forward_t directly and skip this transpose HBM pass.
    outT = cartpole_critic_forward_t(jnp.transpose(x), params,
                                     target_tb=target_tb, use_bf16=use_bf16)
    return jnp.transpose(outT)


def init_params(key):
    """Init mirroring the PyTorch module: W ~ N(0, 0.03), bias = 0.1.

    Weights in PyTorch layout (out, in); biases as (out, 1) columns.
    """
    k1, k2, k3 = jax.random.split(key, 3)
    std = 0.03
    w1 = jax.random.normal(k1, (HIDDEN1, IN_FEATURES), jnp.float32) * std
    b1 = jnp.full((HIDDEN1, 1), 0.1, jnp.float32)
    w2 = jax.random.normal(k2, (HIDDEN2, HIDDEN1), jnp.float32) * std
    b2 = jnp.full((HIDDEN2, 1), 0.1, jnp.float32)
    w3 = jax.random.normal(k3, (OUT_FEATURES, HIDDEN2), jnp.float32) * std
    b3 = jnp.full((OUT_FEATURES, 1), 0.1, jnp.float32)
    return (w1, b1, w2, b2, w3, b3)


def reference_forward(x, params):
    w1, b1, w2, b2, w3, b3 = params
    h1 = jnp.maximum(x @ w1.T + b1.T, 0.0)
    h2 = jnp.maximum(h1 @ w2.T + b2.T, 0.0)
    return h2 @ w3.T + b3.T


if __name__ == "__main__":
    key = jax.random.PRNGKey(0)
    pkey, k1, k2, k3 = jax.random.split(key, 4)
    params = init_params(pkey)

    # 1) Tiny batch through the Pallas path (bf16 MXU operands, f32 accumulation).
    x = jax.random.normal(k1, (8, IN_FEATURES), jnp.float32)
    out = jax.block_until_ready(cartpole_critic_forward(x, params, min_pallas_batch=0))
    ref = reference_forward(x, params)
    assert out.shape == (8, OUT_FEATURES)
    assert jnp.allclose(out, ref, atol=1e-2, rtol=1e-2)

    # 2) Multi-tile grid + (<128-row) padding path, f32 operands -> tight tolerance.
    x2 = jax.random.normal(k2, (260, IN_FEATURES), jnp.float32)
    out2 = jax.block_until_ready(
        cartpole_critic_forward(x2, params, target_tb=128, use_bf16=False,
                                min_pallas_batch=0))
    ref2 = reference_forward(x2, params)
    assert out2.shape == (260, OUT_FEATURES)
    assert jnp.allclose(out2, ref2, atol=1e-5, rtol=1e-5)

    # 3) Feature-major entry (no wrapper transpose), 2 grid steps, bf16 path.
    x3 = jax.random.normal(k3, (IN_FEATURES, 512), jnp.float32)
    out3 = jax.block_until_ready(cartpole_critic_forward_t(x3, params, target_tb=256))
    ref3 = jnp.transpose(reference_forward(jnp.transpose(x3), params))
    assert out3.shape == (OUT_FEATURES, 512)
    assert jnp.allclose(out3, ref3, atol=1e-2, rtol=1e-2)

    # 4) Small-batch dispatch falls back to plain XLA (no Pallas launch).
    x4 = jax.random.normal(k1, (16, IN_FEATURES), jnp.float32)
    out4 = jax.block_until_ready(cartpole_critic_forward(x4, params))
    assert jnp.allclose(out4, reference_forward(x4, params), atol=1e-6, rtol=1e-6)

    print("KERNEL_OK")
</pallas_src>

<mosaic_0001>
module attributes {stable_mosaic.version = 11 : i64} {
  func.func @_critic_mlp_kernel(%arg0: i32, %arg1: memref<4x128xf32, #tpu.memory_space<vmem>>, %arg2: memref<30x4xbf16, #tpu.memory_space<vmem>>, %arg3: memref<30x1xf32, #tpu.memory_space<vmem>>, %arg4: memref<20x30xbf16, #tpu.memory_space<vmem>>, %arg5: memref<20x1xf32, #tpu.memory_space<vmem>>, %arg6: memref<2x20xbf16, #tpu.memory_space<vmem>>, %arg7: memref<2x1xf32, #tpu.memory_space<vmem>>, %arg8: memref<2x128xf32, #tpu.memory_space<vmem>>) attributes {dimension_semantics = [#tpu.dimension_semantics<parallel>], iteration_bounds = array<i64: 1>, scalar_prefetch = 0 : i64, scratch_operands = 0 : i64, tpu.core_type = #tpu.core_type<tc>, window_params = [{transform_indices = @transform_0, window_bounds = array<i64: 4, 128>}, {pipeline_mode = #tpu.pipeline_mode<synchronous>, transform_indices = @transform_1, window_bounds = array<i64: 30, 4>}, {pipeline_mode = #tpu.pipeline_mode<synchronous>, transform_indices = @transform_2, window_bounds = array<i64: 30, 1>}, {pipeline_mode = #tpu.pipeline_mode<synchronous>, transform_indices = @transform_3, window_bounds = array<i64: 20, 30>}, {pipeline_mode = #tpu.pipeline_mode<synchronous>, transform_indices = @transform_4, window_bounds = array<i64: 20, 1>}, {pipeline_mode = #tpu.pipeline_mode<synchronous>, transform_indices = @transform_5, window_bounds = array<i64: 2, 20>}, {pipeline_mode = #tpu.pipeline_mode<synchronous>, transform_indices = @transform_6, window_bounds = array<i64: 2, 1>}, {transform_indices = @transform_7, window_bounds = array<i64: 2, 128>}]} {
    %c0 = arith.constant 0 : index
    %c0_0 = arith.constant 0 : index
    %0 = vector.load %arg1[%c0, %c0_0] : memref<4x128xf32, #tpu.memory_space<vmem>>, vector<4x128xf32>
    %1 = arith.truncf %0 : vector<4x128xf32> to vector<4x128xbf16>
    %c0_1 = arith.constant 0 : index
    %c0_2 = arith.constant 0 : index
    %2 = vector.load %arg2[%c0_1, %c0_2] : memref<30x4xbf16, #tpu.memory_space<vmem>>, vector<30x4xbf16>
    %cst = arith.constant dense<0.000000e+00> : vector<30x128xf32>
    %3 = tpu.matmul %2, %1, %cst {dimension_numbers = #tpu.dot_dimension_numbers<[1], [0], [0], [1], [0, 0, 1, 1], [], []>} : vector<30x4xbf16>, vector<4x128xbf16>, vector<30x128xf32> -> vector<30x128xf32>
    %c0_3 = arith.constant 0 : index
    %c0_4 = arith.constant 0 : index
    %4 = vector.load %arg3[%c0_3, %c0_4] : memref<30x1xf32, #tpu.memory_space<vmem>>, vector<30x1xf32>
    %5 = vector.broadcast %4 : vector<30x1xf32> to vector<30x128xf32>
    %6 = arith.addf %3, %5 : vector<30x128xf32>
    %cst_5 = arith.constant 0.000000e+00 : f32
    %7 = vector.broadcast %cst_5 : f32 to vector<30x128xf32>
    %8 = arith.maximumf %6, %7 : vector<30x128xf32>
    %9 = arith.truncf %8 : vector<30x128xf32> to vector<30x128xbf16>
    %c0_6 = arith.constant 0 : index
    %c0_7 = arith.constant 0 : index
    %10 = vector.load %arg4[%c0_6, %c0_7] : memref<20x30xbf16, #tpu.memory_space<vmem>>, vector<20x30xbf16>
    %cst_8 = arith.constant dense<0.000000e+00> : vector<20x128xf32>
    %11 = tpu.matmul %10, %9, %cst_8 {dimension_numbers = #tpu.dot_dimension_numbers<[1], [0], [0], [1], [0, 0, 1, 1], [], []>} : vector<20x30xbf16>, vector<30x128xbf16>, vector<20x128xf32> -> vector<20x128xf32>
    %c0_9 = arith.constant 0 : index
    %c0_10 = arith.constant 0 : index
    %12 = vector.load %arg5[%c0_9, %c0_10] : memref<20x1xf32, #tpu.memory_space<vmem>>, vector<20x1xf32>
    %13 = vector.broadcast %12 : vector<20x1xf32> to vector<20x128xf32>
    %14 = arith.addf %11, %13 : vector<20x128xf32>
    %cst_11 = arith.constant 0.000000e+00 : f32
    %15 = vector.broadcast %cst_11 : f32 to vector<20x128xf32>
    %16 = arith.maximumf %14, %15 : vector<20x128xf32>
    %17 = arith.truncf %16 : vector<20x128xf32> to vector<20x128xbf16>
    %c0_12 = arith.constant 0 : index
    %c0_13 = arith.constant 0 : index
    %18 = vector.load %arg6[%c0_12, %c0_13] : memref<2x20xbf16, #tpu.memory_space<vmem>>, vector<2x20xbf16>
    %cst_14 = arith.constant dense<0.000000e+00> : vector<2x128xf32>
    %19 = tpu.matmul %18, %17, %cst_14 {dimension_numbers = #tpu.dot_dimension_numbers<[1], [0], [0], [1], [0, 0, 1, 1], [], []>} : vector<2x20xbf16>, vector<20x128xbf16>, vector<2x128xf32> -> vector<2x128xf32>
    %c0_15 = arith.constant 0 : index
    %c0_16 = arith.constant 0 : index
    %20 = vector.load %arg7[%c0_15, %c0_16] : memref<2x1xf32, #tpu.memory_space<vmem>>, vector<2x1xf32>
    %21 = vector.broadcast %20 : vector<2x1xf32> to vector<2x128xf32>
    %22 = arith.addf %19, %21 : vector<2x128xf32>
    %c0_17 = arith.constant 0 : index
    %c0_18 = arith.constant 0 : index
    %23 = vector.load %arg8[%c0_17, %c0_18] : memref<2x128xf32, #tpu.memory_space<vmem>>, vector<2x128xf32>
    tpu.vector_store %arg8[%c0_17, %c0_18], %22 {strides = array<i32>} : memref<2x128xf32, #tpu.memory_space<vmem>>, vector<2x128xf32>,
    return
  }
  func.func @transform_0(%arg0: i32) -> (i32, i32) {
    %c0_i32 = arith.constant 0 : i32
    %c0_i32_0 = arith.constant 0 : i32
    return %c0_i32, %arg0 : i32, i32
  }
  func.func @transform_1(%arg0: i32) -> (i32, i32) {
    %c0_i32 = arith.constant 0 : i32
    %c0_i32_0 = arith.constant 0 : i32
    %c0_i32_1 = arith.constant 0 : i32
    return %c0_i32, %c0_i32_0 : i32, i32
  }
  func.func @transform_2(%arg0: i32) -> (i32, i32) {
    %c0_i32 = arith.constant 0 : i32
    %c0_i32_0 = arith.constant 0 : i32
    %c0_i32_1 = arith.constant 0 : i32
    return %c0_i32, %c0_i32_0 : i32, i32
  }
  func.func @transform_3(%arg0: i32) -> (i32, i32) {
    %c0_i32 = arith.constant 0 : i32
    %c0_i32_0 = arith.constant 0 : i32
    %c0_i32_1 = arith.constant 0 : i32
    return %c0_i32, %c0_i32_0 : i32, i32
  }
  func.func @transform_4(%arg0: i32) -> (i32, i32) {
    %c0_i32 = arith.constant 0 : i32
    %c0_i32_0 = arith.constant 0 : i32
    %c0_i32_1 = arith.constant 0 : i32
    return %c0_i32, %c0_i32_0 : i32, i32
  }
  func.func @transform_5(%arg0: i32) -> (i32, i32) {
    %c0_i32 = arith.constant 0 : i32
    %c0_i32_0 = arith.constant 0 : i32
    %c0_i32_1 = arith.constant 0 : i32
    return %c0_i32, %c0_i32_0 : i32, i32
  }
  func.func @transform_6(%arg0: i32) -> (i32, i32) {
    %c0_i32 = arith.constant 0 : i32
    %c0_i32_0 = arith.constant 0 : i32
    %c0_i32_1 = arith.constant 0 : i32
    return %c0_i32, %c0_i32_0 : i32, i32
  }
  func.func @transform_7(%arg0: i32) -> (i32, i32) {
    %c0_i32 = arith.constant 0 : i32
    %c0_i32_0 = arith.constant 0 : i32
    return %c0_i32, %arg0 : i32, i32
  }
}

</mosaic_0001>

<llo_original>
// kernel: tpu_custom_call.1
$region0: #{tpu_custom_call.1}
  #allocation0 [shape = 'u32[]', space=smem, size = 0x4, offset = 0x4, fixed_abs, tag = 'smem constant byte address 0x4 - core index']
  #allocation1 [shape = 'u32[72,128]{1,0:T(1,128)}', space=vmem, size = 0x9000, scoped, tag = 'internal scratch']
  %s0 = inlined_call_operand.vmem [shape: f32[4,128], index: 0, kind: input, shape index: {}]
  %s1 = inlined_call_operand.vmem [shape: bf16[30,4], index: 1, kind: input, shape index: {}]
  %s2 = inlined_call_operand.vmem [shape: f32[30,1], index: 2, kind: input, shape index: {}]
  %s3 = inlined_call_operand.vmem [shape: bf16[20,30], index: 3, kind: input, shape index: {}]
  %s4 = inlined_call_operand.vmem [shape: f32[20,1], index: 4, kind: input, shape index: {}]
  %s5 = inlined_call_operand.vmem [shape: bf16[2,20], index: 5, kind: input, shape index: {}]
  %s6 = inlined_call_operand.vmem [shape: f32[2,1], index: 6, kind: input, shape index: {}]
  %s7 = inlined_call_operand.hbm [shape: f32[2,128], index: 7, kind: output, shape index: {}]
  %s8 = sld [smem:[#allocation0]]
  $region38: #{tpu_custom_call.1} parent=0
    _
  %s10 = ssub.s32 1, %s8
  %s11 = scalar_select 0, %s10, %s8
  $region1: #{tpu_custom_call.1} parent=0
    #allocation2 [shape = 'u8[1024]{0}', space=vmem, size = 0x400, scoped, tag = 'output window, operand 0, single buffered']
    #allocation3 [shape = 's32[1]{0}', space=sflag, size = 0x4, scoped, tag = 'scoped memory for tpu_custom_call.1']
    %12 = vsyncpa [#allocation3], 0
    // Predicated region
    $region2: #{tpu_custom_call.1} parent=1 // pred_check
      _
    $region3: #{tpu_custom_call.1} parent=1 // pred_check_branch
      %14 = sbr.rel (0) target = $region5
    $region4: #{tpu_custom_call.1} parent=1 // pred_region
      _
    $region5: #{tpu_custom_call.1} parent=1 // pred_fallthru
      _
    // Predicated region
    $region6: #{tpu_custom_call.1} parent=1 // pred_check
      _
    $region7: #{tpu_custom_call.1} parent=1 // pred_check_branch
      %16 = sbr.rel (0) target = $region9
    $region8: #{tpu_custom_call.1} parent=1 // pred_region
      _
    $region9: #{tpu_custom_call.1} parent=1 // pred_fallthru
      _
    // Predicated region
    $region10: #{tpu_custom_call.1} parent=1 // pred_check
      _
    $region11: #{tpu_custom_call.1} parent=1 // pred_check_branch
      %18 = sbr.rel (0) target = $region13
    $region12: #{tpu_custom_call.1} parent=1 // pred_region
      _
    $region13: #{tpu_custom_call.1} parent=1 // pred_fallthru
      _
    // Predicated region
    $region14: #{tpu_custom_call.1} parent=1 // pred_check
      _
    $region15: #{tpu_custom_call.1} parent=1 // pred_check_branch
      %20 = sbr.rel (0) target = $region17
    $region16: #{tpu_custom_call.1} parent=1 // pred_region
      _
    $region17: #{tpu_custom_call.1} parent=1 // pred_fallthru
      _
    // Predicated region
    $region18: #{tpu_custom_call.1} parent=1 // pred_check
      _
    $region19: #{tpu_custom_call.1} parent=1 // pred_check_branch
      %22 = sbr.rel (0) target = $region21
    $region20: #{tpu_custom_call.1} parent=1 // pred_region
      _
    $region21: #{tpu_custom_call.1} parent=1 // pred_fallthru
      _
    // Predicated region
    $region22: #{tpu_custom_call.1} parent=1 // pred_check
      _
    $region23: #{tpu_custom_call.1} parent=1 // pred_check_branch
      %24 = sbr.rel (0) target = $region25
    $region24: #{tpu_custom_call.1} parent=1 // pred_region
      _
    $region25: #{tpu_custom_call.1} parent=1 // pred_fallthru
      _
    // Predicated region
    $region26: #{tpu_custom_call.1} parent=1 // pred_check
      _
    $region27: #{tpu_custom_call.1} parent=1 // pred_check_branch
      %26 = sbr.rel (0) target = $region29
    $region28: #{tpu_custom_call.1} parent=1 // pred_region
      _
    $region29: #{tpu_custom_call.1} parent=1 // pred_fallthru
      _
    %v28 = vld [vmem:[%s0] sm:$0xf]
    %v29 = vpack.c.bf16 %v28, %v28
    %v30 = vld [vmem:[%s1] sm:$0xf]
    %v31 = vld [vmem:[%s1 + $0x4] sm:$0xf]
    %v32 = vld [vmem:[%s1 + $0x8] sm:$0xf]
    %v33 = vld [vmem:[%s1 + $0xc] sm:$0x7]
    %v34 = vld [vmem:[%s2] sm:$0xff]
    %v35 = vld [vmem:[%s2 + $0x8] sm:$0xff]
    %v36 = vld [vmem:[%s2 + $0x10] sm:$0xff]
    %v37 = vld [vmem:[%s2 + $0x18] sm:$0x3f]
    %39 = vset.pattern.permute.xlu0 0
    %40 = vperm.xlu0 %39, %v34
    %v41 = vpop.permute.xlu0 %40
    %44 = vset.pattern.permute.xlu0 0
    %45 = vperm.xlu0 %44, %v35
    %v46 = vpop.permute.xlu0 %45
    %49 = vset.pattern.permute.xlu0 0
    %50 = vperm.xlu0 %49, %v36
    %v51 = vpop.permute.xlu0 %50
    %54 = vset.pattern.permute.xlu0 0
    %55 = vperm.xlu0 %54, %v37
    %v56 = vpop.permute.xlu0 %55
    %v62 = vunpack.c.l.b16 %v30
    %v63 = vunpack.c.l.b16 %v31
    %v64 = vunpack.c.l.b16 %v32
    %v65 = vunpack.c.l.b16 %v33
    %v66 = vpack.c.b16 %v63, %v62
    %v67 = vpack.c.b16 %v65, %v64
    %vm68 = vcmask 31744
    %v70 = vsel %vm68, %v66, 0
    %v73 = vsel %vm68, %v67, 0
    %vm75 = vcmask 1041408
    %v77 = vsel %vm75, %v29, 0
    %79 = vmatpush.bf16.msra.mxu0 0
    %80 = vmatpush.bf16.msra.mxu0 0
    %81 = vmatpush.bf16.msra.mxu0 0
    %82 = vmatpush.bf16.msra.mxu0 0
    %83 = vmatpush.bf16.msra.mxu0 0
    %84 = vmatpush.bf16.msra.mxu0 0
    %85 = vmatpush.bf16.msra.mxu0 0
    %86 = vmatpush.bf16.msra.mxu0 %v77
    %87 = vmatmul.bf16.gmra.mxu0 %v70
    %v88 = vpop.f32.mrf.mxu0
    %v89 = vadd.f32 %v41, %v88
    %v90 = vpop.f32.mrf.mxu0
    %v91 = vadd.f32 %v46, %v90
    %92 = vmatmul.bf16.gmra.mxu0 %v73
    %v93 = vpop.f32.mrf.mxu0
    %v94 = vadd.f32 %v51, %v93
    %v95 = vpop.f32.mrf.mxu0
    %v96 = vadd.f32 %v56, %v95
    %97 = vdwg.mxu0
    %v98 = vmax.f32 %v89, 0.0
    %v99 = vmax.f32 %v91, 0.0
    %v100 = vmax.f32 %v94, 0.0
    %v101 = vmax.f32 %v96, 0.0
    %v102 = vpack.c.bf16 %v99, %v98
    %v103 = vpack.c.bf16 %v101, %v100
    %v104 = vld [vmem:[%s3] sm:$0xf]
    %v105 = vld [vmem:[%s3 + $0x4] sm:$0xf]
    %v106 = vld [vmem:[%s3 + $0x8] sm:$0x3]
    %v107 = vld [vmem:[%s4] sm:$0xff]
    %v108 = vld [vmem:[%s4 + $0x8] sm:$0xff]
    %v109 = vld [vmem:[%s4 + $0x10] sm:$0xf]
    %111 = vset.pattern.permute.xlu0 0
    %112 = vperm.xlu0 %111, %v107
    %v113 = vpop.permute.xlu0 %112
    %116 = vset.pattern.permute.xlu0 0
    %117 = vperm.xlu0 %116, %v108
    %v118 = vpop.permute.xlu0 %117
    %121 = vset.pattern.permute.xlu0 0
    %122 = vperm.xlu0 %121, %v109
    %v123 = vpop.permute.xlu0 %122
    %v128 = vunpack.c.l.b16 %v104
    %v129 = vunpack.c.l.b16 %v105
    %v130 = vunpack.c.l.b16 %v106
    %v131 = vpack.c.b16 %v129, %v128
    %v132 = vpack.c.b16 %v130, %v130
    %vm133 = vcmask 244736
    %v135 = vsel %vm133, %v131, 0
    %v138 = vsel %vm133, %v132, 0
    %vm140 = vcmask 1046528
    %v142 = vsel %vm140, %v103, 0
    %144 = vmatpush.bf16.msra.mxu0 0
    %145 = vmatpush.bf16.msra.mxu0 0
    %146 = vmatpush.bf16.msra.mxu0 0
    %147 = vmatpush.bf16.msra.mxu0 0
    %148 = vmatpush.bf16.msra.mxu0 0
    %149 = vmatpush.bf16.msra.mxu0 0
    %150 = vmatpush.bf16.msra.mxu0 %v142
    %151 = vmatpush.bf16.msra.mxu0 %v102
    %152 = vmatmul.bf16.gmra.mxu0 %v135
    %v153 = vpop.f32.mrf.mxu0
    %v154 = vadd.f32 %v113, %v153
    %v155 = vpop.f32.mrf.mxu0
    %v156 = vadd.f32 %v118, %v155
    %157 = vmatmul.bf16.gmra.mxu0 %v138
    %v158 = vpop.f32.mrf.mxu0
    %v159 = vadd.f32 %v123, %v158
    %v160 = vpop.f32.mrf.mxu0
    %161 = vdwg.mxu0
    %v162 = vmax.f32 %v154, 0.0
    %v163 = vmax.f32 %v156, 0.0
    %v164 = vmax.f32 %v159, 0.0
    %v165 = vpack.c.bf16 %v163, %v162
    %v166 = vpack.c.bf16 %v164, %v164
    %v167 = vld [vmem:[%s5] sm:$0x1]
    %v168 = vld [vmem:[%s6] sm:$0x3]
    %170 = vset.pattern.permute.xlu0 0
    %171 = vperm.xlu0 %170, %v168
    %v172 = vpop.permute.xlu0 %171
    %vm174 = vcmask 162816
    %v176 = vsel %vm174, %v167, 0
    %v179 = vsel %vm75, %v166, 0
    %181 = vmatpush.bf16.msra.mxu0 0
    %182 = vmatpush.bf16.msra.mxu0 0
    %183 = vmatpush.bf16.msra.mxu0 0
    %184 = vmatpush.bf16.msra.mxu0 0
    %185 = vmatpush.bf16.msra.mxu0 0
    %186 = vmatpush.bf16.msra.mxu0 0
    %187 = vmatpush.bf16.msra.mxu0 %v179
    %188 = vmatpush.bf16.msra.mxu0 %v165
    %189 = vmatmul.bf16.gmra.mxu0 %v176
    %v190 = vpop.f32.mrf.mxu0
    %v191 = vadd.f32 %v172, %v190
    %v192 = vpop.f32.mrf.mxu0
    %193 = vdwg.mxu0
    %194 = vst [vmem:[#allocation2] sm:$0x3] %v191
    // Predicated region
    $region30: #{tpu_custom_call.1} parent=1 // pred_check
      _
    $region31: #{tpu_custom_call.1} parent=1 // pred_check_branch
      %196 = sbr.rel (0) target = $region33
    $region32: #{tpu_custom_call.1} parent=1 // pred_region
      %198 = vsyncadd [#allocation3], 0
      %s200 = sshll.u32 [#allocation2], 4
      %s201 = int_to_ptr.vmem [resolvable:$true] %s200
      %s202 = sshll.u32 %s7, 4
      %s203 = int_to_ptr.hbm [resolvable:$true] %s202
      %205 = dma.vmem_to_hbm [thread:$0]  %s201, 32, %s203, [#allocation3]
    $region33: #{tpu_custom_call.1} parent=1 // pred_fallthru
      _
    // Predicated region
    $region34: #{tpu_custom_call.1} parent=1 // pred_check
      _
    $region35: #{tpu_custom_call.1} parent=1 // pred_check_branch
      %207 = sbr.rel (0) target = $region37
    $region36: #{tpu_custom_call.1} parent=1 // pred_region
      %209 = dma.done [#allocation3], 32
    $region37: #{tpu_custom_call.1} parent=1 // pred_fallthru
      _
    %210 = vsyncpa [#allocation3], 1

</llo_original>
